<compile_context>
chip_gen: v6e
topology: v6e:2x2x1
jax: 0.10.0
libtpu: 0.0.40
codegen_flags: <defaults>
</compile_context>

<pallas_src>
import jax
import jax.numpy as jnp
from jax import lax
from jax.experimental import pallas as pl
from jax.experimental.pallas import tpu as pltpu


# --------------------------------------------------------------------------
# Kernel
# --------------------------------------------------------------------------
def _make_generator_kernel(interleaved_batches):
    """Fused forward kernel.

    interleaved_batches == 1 : the x block holds a single batch.
    interleaved_batches == N : the x block is the (L, N, E) -> (L*N, E)
        flatten; row r belongs to batch (r % N), so attention is masked
        block-diagonally on (row % N) == (col % N).
    """
    nb = int(interleaved_batches)

    def kernel(x_ref,
               wqkv_ref, bqkv_ref,
               wo_ref, bo_ref,
               gamma_ref, beta_ref,
               w1_ref, b1_ref,
               w2_ref, b2_ref,
               o_ref):
        E = x_ref.shape[-1]
        x = x_ref[...].reshape(-1, E).astype(jnp.float32)      # (R, E)
        xb = x.astype(jnp.bfloat16)

        # --- Fused QKV projection (1/sqrt(E) already folded into q columns).
        qkv = jnp.dot(xb, wqkv_ref[...],
                      preferred_element_type=jnp.float32) + bqkv_ref[...]
        q = qkv[:, 0:E]
        k = qkv[:, E:2 * E]
        v = qkv[:, 2 * E:3 * E]

        # --- Attention scores: contract last dims directly (no explicit k.T).
        s = lax.dot_general(q.astype(jnp.bfloat16), k.astype(jnp.bfloat16),
                            (((1,), (1,)), ((), ())),
                            preferred_element_type=jnp.float32)  # (R, R)

        if nb > 1:
            r = s.shape[0]
            ri = lax.broadcasted_iota(jnp.int32, (r, r), 0)
            ci = lax.broadcasted_iota(jnp.int32, (r, r), 1)
            if nb & (nb - 1) == 0:                       # power of two -> AND
                same = (ri & (nb - 1)) == (ci & (nb - 1))
            else:
                same = (ri % nb) == (ci % nb)
            s = jnp.where(same, s, jnp.float32(-1e30))

        # --- Softmax (exact division, f32).
        s = s - jnp.max(s, axis=-1, keepdims=True)
        p = jnp.exp(s)
        p = p / jnp.sum(p, axis=-1, keepdims=True)

        attn = jnp.dot(p.astype(jnp.bfloat16), v.astype(jnp.bfloat16),
                       preferred_element_type=jnp.float32)        # (R, E)
        a = jnp.dot(attn.astype(jnp.bfloat16), wo_ref[...],
                    preferred_element_type=jnp.float32) + bo_ref[...]

        # --- LayerNorm (eps = 1e-5, PyTorch default), f32.
        mean = jnp.mean(a, axis=-1, keepdims=True)
        ctr = a - mean
        var = jnp.mean(ctr * ctr, axis=-1, keepdims=True)
        y = ctr * lax.rsqrt(var + 1e-5) * gamma_ref[...] + beta_ref[...]

        # --- MLP: Linear(E, 512) -> ReLU -> Linear(512, out_dim).
        h = jnp.dot(y.astype(jnp.bfloat16), w1_ref[...],
                    preferred_element_type=jnp.float32) + b1_ref[...]
        h = jnp.maximum(h, 0.0)
        out = jnp.dot(h.astype(jnp.bfloat16), w2_ref[...],
                      preferred_element_type=jnp.float32) + b2_ref[...]

        o_ref[...] = out.reshape(o_ref.shape).astype(o_ref.dtype)

    return kernel


# --------------------------------------------------------------------------
# Wrapper
# --------------------------------------------------------------------------
def _full_spec(shape):
    rank = len(shape)
    return pl.BlockSpec(shape, lambda *_: (0,) * rank)


def _weight_tuple(kp):
    return (kp["wqkv"], kp["bqkv"], kp["wo"], kp["bo"],
            kp["gamma"], kp["beta"], kp["w1"], kp["b1"],
            kp["w2"], kp["b2"])


def _weight_bytes(weights):
    return sum(int(w.size) * w.dtype.itemsize for w in weights)


def generator_forward(x_lne, kparams, flat_row_limit=2048):
    """x_lne: (L, N, E) float32 (the layout the PyTorch module expects).
    kparams: output of prepare_kernel_params.  Returns (L, N, out_dim)."""
    L, N, E = x_lne.shape
    OUT = kparams["w2"].shape[1]
    H = kparams["w1"].shape[1]
    weights = _weight_tuple(kparams)
    wb = _weight_bytes(weights)
    R = L * N

    if R <= flat_row_limit or N == 1:
        # Single invocation: flatten (L,N,E)->(L*N,E) (contiguous, free) and
        # keep batches separated via block-diagonal masking.  No transposes,
        # no per-batch grid overhead, weights fetched exactly once.
        x_flat = x_lne.reshape(R, E)
        cost = pl.CostEstimate(
            flops=2 * R * E * 3 * E + 4 * R * R * E
                  + 2 * R * E * E + 2 * R * E * H + 2 * R * H * OUT,
            transcendentals=R * R + 2 * R,
            bytes_accessed=R * E * 4 + wb + R * OUT * 4)
        out_flat = pl.pallas_call(
            _make_generator_kernel(N),
            out_shape=jax.ShapeDtypeStruct((R, OUT), jnp.float32),
            grid_spec=pltpu.PrefetchScalarGridSpec(
                num_scalar_prefetch=0,
                grid=(1,),
                in_specs=[pl.BlockSpec((R, E), lambda i: (0, 0))]
                         + [_full_spec(w.shape) for w in weights],
                out_specs=pl.BlockSpec((R, OUT), lambda i: (0, 0)),
            ),
            compiler_params=pltpu.CompilerParams(
                dimension_semantics=("arbitrary",)),
            cost_estimate=cost,
        )(x_flat, *weights)
        return out_flat.reshape(L, N, OUT)

    # Large-problem fallback: per-batch grid (sharded across TensorCores on
    # multi-TC chips).  The batch axis of the original (L, N, E) layout is
    # indexed directly so no wrapper transposes are needed.
    # TODO(synk): tile q rows with an online-softmax accumulator if L alone
    # grows large enough that the per-batch (L, L) score matrix stresses VMEM.
    cost = pl.CostEstimate(
        flops=N * (2 * L * E * 3 * E + 4 * L * L * E
                   + 2 * L * E * E + 2 * L * E * H + 2 * L * H * OUT),
        transcendentals=N * (L * L + 2 * L),
        bytes_accessed=L * N * E * 4 + N * wb + L * N * OUT * 4)
    return pl.pallas_call(
        _make_generator_kernel(1),
        out_shape=jax.ShapeDtypeStruct((L, N, OUT), jnp.float32),
        grid_spec=pltpu.PrefetchScalarGridSpec(
            num_scalar_prefetch=0,
            grid=(N,),
            in_specs=[pl.BlockSpec((L, 1, E), lambda b: (0, b, 0))]
                     + [_full_spec(w.shape) for w in weights],
            out_specs=pl.BlockSpec((L, 1, OUT), lambda b: (0, b, 0)),
        ),
        compiler_params=pltpu.CompilerParams(
            dimension_semantics=("parallel",)),
        cost_estimate=cost,
    )(x_lne, *weights)


# --------------------------------------------------------------------------
# Parameters
# --------------------------------------------------------------------------
def init_params(key, input_dim, output_dim, hidden=512):
    """Deterministic synthetic parameters matching the PyTorch module's shapes.
    Projection weights stored pre-transposed to (in, out); biases (1, out)."""
    ks = jax.random.split(key, 10)
    s = 0.05
    return {
        "wq": jax.random.normal(ks[0], (input_dim, input_dim), jnp.float32) * s,
        "wk": jax.random.normal(ks[1], (input_dim, input_dim), jnp.float32) * s,
        "wv": jax.random.normal(ks[2], (input_dim, input_dim), jnp.float32) * s,
        "bq": jax.random.normal(ks[3], (1, input_dim), jnp.float32) * s,
        "bk": jax.random.normal(ks[4], (1, input_dim), jnp.float32) * s,
        "bv": jax.random.normal(ks[5], (1, input_dim), jnp.float32) * s,
        "wo": jax.random.normal(ks[6], (input_dim, input_dim), jnp.float32) * s,
        "bo": jnp.zeros((1, input_dim), jnp.float32),
        "gamma": jnp.ones((1, input_dim), jnp.float32),
        "beta": jnp.zeros((1, input_dim), jnp.float32),
        "w1": jax.random.normal(ks[7], (input_dim, hidden), jnp.float32) * s,
        "b1": jax.random.normal(ks[8], (1, hidden), jnp.float32) * s,
        "w2": jax.random.normal(ks[9], (hidden, output_dim), jnp.float32) * s,
        "b2": jnp.zeros((1, output_dim), jnp.float32),
    }


def prepare_kernel_params(params, use_bf16=True):
    """One-time parameter prep:
      * fuse wq/wk/wv (and bq/bk/bv) into one (E, 3E) / (1, 3E) tensor,
      * fold the 1/sqrt(E) attention scale into the q columns,
      * store the matmul weights as bfloat16 (biases/gamma/beta stay f32)."""
    E = params["wq"].shape[0]
    scale = jnp.float32(1.0 / (float(E) ** 0.5))
    wdt = jnp.bfloat16 if use_bf16 else jnp.float32
    wqkv = jnp.concatenate(
        [params["wq"] * scale, params["wk"], params["wv"]], axis=1)
    bqkv = jnp.concatenate(
        [params["bq"] * scale, params["bk"], params["bv"]], axis=1)
    return {
        "wqkv": wqkv.astype(wdt),
        "bqkv": bqkv.astype(jnp.float32),
        "wo": params["wo"].astype(wdt),
        "bo": params["bo"].astype(jnp.float32),
        "gamma": params["gamma"].astype(jnp.float32),
        "beta": params["beta"].astype(jnp.float32),
        "w1": params["w1"].astype(wdt),
        "b1": params["b1"].astype(jnp.float32),
        "w2": params["w2"].astype(wdt),
        "b2": params["b2"].astype(jnp.float32),
    }


# --------------------------------------------------------------------------
# Pure-JAX references
# --------------------------------------------------------------------------
def generator_reference(x_lne, params):
    """PyTorch forward semantics, full f32."""
    E = x_lne.shape[-1]
    x = jnp.transpose(x_lne, (1, 0, 2)).astype(jnp.float32)   # (N, L, E)
    q = x @ params["wq"] + params["bq"]
    k = x @ params["wk"] + params["bk"]
    v = x @ params["wv"] + params["bv"]
    s = jnp.einsum("nqe,nke->nqk", q, k) / jnp.sqrt(jnp.float32(E))
    p = jax.nn.softmax(s, axis=-1)
    a = jnp.einsum("nqk,nke->nqe", p, v)
    a = a @ params["wo"] + params["bo"]
    mean = a.mean(-1, keepdims=True)
    var = ((a - mean) ** 2).mean(-1, keepdims=True)
    y = (a - mean) / jnp.sqrt(var + 1e-5) * params["gamma"] + params["beta"]
    h = jnp.maximum(y @ params["w1"] + params["b1"], 0.0)
    out = h @ params["w2"] + params["b2"]
    return jnp.transpose(out, (1, 0, 2))                      # (L, N, out)


def generator_reference_matched(x_lne, kp):
    """Same math as the kernel (fused QKV, identical bf16 cast points,
    f32 accumulation) in plain JAX — used for the tight correctness check."""
    E = kp["gamma"].shape[-1]
    wdt = kp["wqkv"].dtype
    x = jnp.transpose(x_lne, (1, 0, 2)).astype(jnp.float32)   # (N, L, E)
    qkv = jnp.einsum("nle,ef->nlf", x.astype(wdt), kp["wqkv"],
                     preferred_element_type=jnp.float32) + kp["bqkv"]
    q, k, v = qkv[..., :E], qkv[..., E:2 * E], qkv[..., 2 * E:]
    s = jnp.einsum("nqe,nke->nqk", q.astype(wdt), k.astype(wdt),
                   preferred_element_type=jnp.float32)
    s = s - s.max(-1, keepdims=True)
    p = jnp.exp(s)
    p = p / p.sum(-1, keepdims=True)
    attn = jnp.einsum("nqk,nke->nqe", p.astype(wdt), v.astype(wdt),
                      preferred_element_type=jnp.float32)
    a = jnp.einsum("nle,ef->nlf", attn.astype(wdt), kp["wo"],
                   preferred_element_type=jnp.float32) + kp["bo"]
    mean = a.mean(-1, keepdims=True)
    ctr = a - mean
    var = (ctr * ctr).mean(-1, keepdims=True)
    y = ctr * lax.rsqrt(var + 1e-5) * kp["gamma"] + kp["beta"]
    h = jnp.maximum(
        jnp.einsum("nle,eh->nlh", y.astype(wdt), kp["w1"],
                   preferred_element_type=jnp.float32) + kp["b1"], 0.0)
    out = jnp.einsum("nlh,ho->nlo", h.astype(wdt), kp["w2"],
                     preferred_element_type=jnp.float32) + kp["b2"]
    return jnp.transpose(out, (1, 0, 2))


# --------------------------------------------------------------------------
if __name__ == "__main__":
    SEQ, BATCH, INPUT_DIM, OUTPUT_DIM = 8, 2, 32, 16

    key = jax.random.PRNGKey(0)
    kx, kparam = jax.random.split(key)
    x = jax.random.normal(kx, (SEQ, BATCH, INPUT_DIM), jnp.float32)  # (L, N, E)

    params = init_params(kparam, INPUT_DIM, OUTPUT_DIM)
    kernel_params = prepare_kernel_params(params, use_bf16=True)     # one-time

    fwd = jax.jit(generator_forward)
    out = jax.block_until_ready(fwd(x, kernel_params))
    assert out.shape == (SEQ, BATCH, OUTPUT_DIM), out.shape

    # Tight check: kernel vs. a pure-JAX reference with identical bf16
    # quantization points (validates the kernel math itself).
    ref_matched = generator_reference_matched(x, kernel_params)
    err_matched = float(jnp.max(jnp.abs(out - ref_matched)))
    assert jnp.allclose(out, ref_matched, rtol=2e-3, atol=2e-3), err_matched

    # Sanity check: kernel vs. full-f32 PyTorch-semantics reference.  The gap
    # here is bf16 weight/activation quantization (perf-review request), well
    # inside 2e-2 at these magnitudes.
    ref_f32 = generator_reference(x, params)
    err_f32 = float(jnp.max(jnp.abs(out - ref_f32)))
    assert jnp.allclose(out, ref_f32, rtol=2e-2, atol=2e-2), err_f32

    print("KERNEL_OK")
</pallas_src>

<mosaic_0001>
module attributes {stable_mosaic.version = 11 : i64} {
  func.func @kernel(%arg0: i32, %arg1: memref<16x32xf32, #tpu.memory_space<vmem>>, %arg2: memref<32x96xbf16, #tpu.memory_space<vmem>>, %arg3: memref<1x96xf32, #tpu.memory_space<vmem>>, %arg4: memref<32x32xbf16, #tpu.memory_space<vmem>>, %arg5: memref<1x32xf32, #tpu.memory_space<vmem>>, %arg6: memref<1x32xf32, #tpu.memory_space<vmem>>, %arg7: memref<1x32xf32, #tpu.memory_space<vmem>>, %arg8: memref<32x512xbf16, #tpu.memory_space<vmem>>, %arg9: memref<1x512xf32, #tpu.memory_space<vmem>>, %arg10: memref<512x16xbf16, #tpu.memory_space<vmem>>, %arg11: memref<1x16xf32, #tpu.memory_space<vmem>>, %arg12: memref<16x16xf32, #tpu.memory_space<vmem>>) attributes {dimension_semantics = [#tpu.dimension_semantics<arbitrary>], iteration_bounds = array<i64: 1>, scalar_prefetch = 0 : i64, scratch_operands = 0 : i64, tpu.core_type = #tpu.core_type<tc>, window_params = [{pipeline_mode = #tpu.pipeline_mode<synchronous>, transform_indices = @transform_0, window_bounds = array<i64: 16, 32>}, {pipeline_mode = #tpu.pipeline_mode<synchronous>, transform_indices = @transform_1, window_bounds = array<i64: 32, 96>}, {pipeline_mode = #tpu.pipeline_mode<synchronous>, transform_indices = @transform_2, window_bounds = array<i64: 1, 96>}, {pipeline_mode = #tpu.pipeline_mode<synchronous>, transform_indices = @transform_3, window_bounds = array<i64: 32, 32>}, {pipeline_mode = #tpu.pipeline_mode<synchronous>, transform_indices = @transform_4, window_bounds = array<i64: 1, 32>}, {pipeline_mode = #tpu.pipeline_mode<synchronous>, transform_indices = @transform_5, window_bounds = array<i64: 1, 32>}, {pipeline_mode = #tpu.pipeline_mode<synchronous>, transform_indices = @transform_6, window_bounds = array<i64: 1, 32>}, {pipeline_mode = #tpu.pipeline_mode<synchronous>, transform_indices = @transform_7, window_bounds = array<i64: 32, 512>}, {pipeline_mode = #tpu.pipeline_mode<synchronous>, transform_indices = @transform_8, window_bounds = array<i64: 1, 512>}, {pipeline_mode = #tpu.pipeline_mode<synchronous>, transform_indices = @transform_9, window_bounds = array<i64: 512, 16>}, {pipeline_mode = #tpu.pipeline_mode<synchronous>, transform_indices = @transform_10, window_bounds = array<i64: 1, 16>}, {pipeline_mode = #tpu.pipeline_mode<synchronous>, transform_indices = @transform_11, window_bounds = array<i64: 16, 16>}]} {
    %c0 = arith.constant 0 : index
    %c0_0 = arith.constant 0 : index
    %0 = vector.load %arg1[%c0, %c0_0] : memref<16x32xf32, #tpu.memory_space<vmem>>, vector<16x32xf32>
    %1 = arith.truncf %0 : vector<16x32xf32> to vector<16x32xbf16>
    %c0_1 = arith.constant 0 : index
    %c0_2 = arith.constant 0 : index
    %2 = vector.load %arg2[%c0_1, %c0_2] : memref<32x96xbf16, #tpu.memory_space<vmem>>, vector<32x96xbf16>
    %cst = arith.constant dense<0.000000e+00> : vector<16x96xf32>
    %3 = tpu.matmul %1, %2, %cst {dimension_numbers = #tpu.dot_dimension_numbers<[1], [0], [0], [1], [0, 0, 1, 1], [], []>} : vector<16x32xbf16>, vector<32x96xbf16>, vector<16x96xf32> -> vector<16x96xf32>
    %c0_3 = arith.constant 0 : index
    %c0_4 = arith.constant 0 : index
    %4 = vector.load %arg3[%c0_3, %c0_4] : memref<1x96xf32, #tpu.memory_space<vmem>>, vector<1x96xf32>
    %5 = vector.broadcast %4 : vector<1x96xf32> to vector<16x96xf32>
    %6 = arith.addf %3, %5 : vector<16x96xf32>
    %7 = vector.extract_strided_slice %6 {offsets = [0, 0], sizes = [16, 32], strides = [1, 1]} : vector<16x96xf32> to vector<16x32xf32>
    %8 = vector.extract_strided_slice %6 {offsets = [0, 32], sizes = [16, 32], strides = [1, 1]} : vector<16x96xf32> to vector<16x32xf32>
    %9 = vector.extract_strided_slice %6 {offsets = [0, 64], sizes = [16, 32], strides = [1, 1]} : vector<16x96xf32> to vector<16x32xf32>
    %10 = arith.truncf %7 : vector<16x32xf32> to vector<16x32xbf16>
    %11 = arith.truncf %8 : vector<16x32xf32> to vector<16x32xbf16>
    %cst_5 = arith.constant dense<0.000000e+00> : vector<16x16xf32>
    %12 = tpu.matmul %10, %11, %cst_5 {dimension_numbers = #tpu.dot_dimension_numbers<[1], [1], [0], [0], [0, 0, 1, 0], [], []>} : vector<16x32xbf16>, vector<16x32xbf16>, vector<16x16xf32> -> vector<16x16xf32>
    %13 = tpu.iota {dimensions = array<i32: 0>} : vector<16x16xi32>
    %14 = tpu.iota {dimensions = array<i32: 1>} : vector<16x16xi32>
    %c1_i32 = arith.constant 1 : i32
    %15 = vector.broadcast %c1_i32 : i32 to vector<16x16xi32>
    %16 = arith.andi %13, %15 : vector<16x16xi32>
    %c1_i32_6 = arith.constant 1 : i32
    %17 = vector.broadcast %c1_i32_6 : i32 to vector<16x16xi32>
    %18 = arith.andi %14, %17 : vector<16x16xi32>
    %19 = arith.cmpi eq, %16, %18 : vector<16x16xi32>
    %cst_7 = arith.constant -1.000000e+30 : f32
    %20 = vector.broadcast %cst_7 : f32 to vector<16x16xf32>
    %21 = arith.select %19, %12, %20 : vector<16x16xi1>, vector<16x16xf32>
    %cst_8 = arith.constant dense<0xFF800000> : vector<16xf32>
    %22 = vector.multi_reduction <maximumf>, %21, %cst_8 [1] : vector<16x16xf32> to vector<16xf32>
    %23 = vector.shape_cast %22 : vector<16xf32> to vector<16x1xf32>
    %24 = vector.broadcast %23 : vector<16x1xf32> to vector<16x16xf32>
    %25 = arith.subf %21, %24 : vector<16x16xf32>
    %26 = math.exp %25 : vector<16x16xf32>
    %cst_9 = arith.constant dense<0.000000e+00> : vector<16xf32>
    %27 = vector.multi_reduction <add>, %26, %cst_9 [1] : vector<16x16xf32> to vector<16xf32>
    %28 = vector.shape_cast %27 : vector<16xf32> to vector<16x1xf32>
    %29 = vector.broadcast %28 : vector<16x1xf32> to vector<16x16xf32>
    %30 = arith.divf %26, %29 : vector<16x16xf32>
    %31 = arith.truncf %30 : vector<16x16xf32> to vector<16x16xbf16>
    %32 = arith.truncf %9 : vector<16x32xf32> to vector<16x32xbf16>
    %cst_10 = arith.constant dense<0.000000e+00> : vector<16x32xf32>
    %33 = tpu.matmul %31, %32, %cst_10 {dimension_numbers = #tpu.dot_dimension_numbers<[1], [0], [0], [1], [0, 0, 1, 1], [], []>} : vector<16x16xbf16>, vector<16x32xbf16>, vector<16x32xf32> -> vector<16x32xf32>
    %34 = arith.truncf %33 : vector<16x32xf32> to vector<16x32xbf16>
    %c0_11 = arith.constant 0 : index
    %c0_12 = arith.constant 0 : index
    %35 = vector.load %arg4[%c0_11, %c0_12] : memref<32x32xbf16, #tpu.memory_space<vmem>>, vector<32x32xbf16>
    %cst_13 = arith.constant dense<0.000000e+00> : vector<16x32xf32>
    %36 = tpu.matmul %34, %35, %cst_13 {dimension_numbers = #tpu.dot_dimension_numbers<[1], [0], [0], [1], [0, 0, 1, 1], [], []>} : vector<16x32xbf16>, vector<32x32xbf16>, vector<16x32xf32> -> vector<16x32xf32>
    %c0_14 = arith.constant 0 : index
    %c0_15 = arith.constant 0 : index
    %37 = vector.load %arg5[%c0_14, %c0_15] : memref<1x32xf32, #tpu.memory_space<vmem>>, vector<1x32xf32>
    %38 = vector.broadcast %37 : vector<1x32xf32> to vector<16x32xf32>
    %39 = arith.addf %36, %38 : vector<16x32xf32>
    %cst_16 = arith.constant dense<0.000000e+00> : vector<16xf32>
    %40 = vector.multi_reduction <add>, %39, %cst_16 [1] : vector<16x32xf32> to vector<16xf32>
    %41 = vector.shape_cast %40 : vector<16xf32> to vector<16x1xf32>
    %cst_17 = arith.constant 3.200000e+01 : f32
    %42 = vector.broadcast %cst_17 : f32 to vector<16x1xf32>
    %43 = arith.divf %41, %42 : vector<16x1xf32>
    %44 = vector.broadcast %43 : vector<16x1xf32> to vector<16x32xf32>
    %45 = arith.subf %39, %44 : vector<16x32xf32>
    %46 = arith.mulf %45, %45 : vector<16x32xf32>
    %cst_18 = arith.constant dense<0.000000e+00> : vector<16xf32>
    %47 = vector.multi_reduction <add>, %46, %cst_18 [1] : vector<16x32xf32> to vector<16xf32>
    %48 = vector.shape_cast %47 : vector<16xf32> to vector<16x1xf32>
    %cst_19 = arith.constant 3.200000e+01 : f32
    %49 = vector.broadcast %cst_19 : f32 to vector<16x1xf32>
    %50 = arith.divf %48, %49 : vector<16x1xf32>
    %cst_20 = arith.constant 9.99999974E-6 : f32
    %51 = vector.broadcast %cst_20 : f32 to vector<16x1xf32>
    %52 = arith.addf %50, %51 : vector<16x1xf32>
    %53 = math.rsqrt %52 : vector<16x1xf32>
    %54 = vector.broadcast %53 : vector<16x1xf32> to vector<16x32xf32>
    %55 = arith.mulf %45, %54 : vector<16x32xf32>
    %c0_21 = arith.constant 0 : index
    %c0_22 = arith.constant 0 : index
    %56 = vector.load %arg6[%c0_21, %c0_22] : memref<1x32xf32, #tpu.memory_space<vmem>>, vector<1x32xf32>
    %57 = vector.broadcast %56 : vector<1x32xf32> to vector<16x32xf32>
    %58 = arith.mulf %55, %57 : vector<16x32xf32>
    %c0_23 = arith.constant 0 : index
    %c0_24 = arith.constant 0 : index
    %59 = vector.load %arg7[%c0_23, %c0_24] : memref<1x32xf32, #tpu.memory_space<vmem>>, vector<1x32xf32>
    %60 = vector.broadcast %59 : vector<1x32xf32> to vector<16x32xf32>
    %61 = arith.addf %58, %60 : vector<16x32xf32>
    %62 = arith.truncf %61 : vector<16x32xf32> to vector<16x32xbf16>
    %c0_25 = arith.constant 0 : index
    %c0_26 = arith.constant 0 : index
    %63 = vector.load %arg8[%c0_25, %c0_26] : memref<32x512xbf16, #tpu.memory_space<vmem>>, vector<32x512xbf16>
    %cst_27 = arith.constant dense<0.000000e+00> : vector<16x512xf32>
    %64 = tpu.matmul %62, %63, %cst_27 {dimension_numbers = #tpu.dot_dimension_numbers<[1], [0], [0], [1], [0, 0, 1, 1], [], []>} : vector<16x32xbf16>, vector<32x512xbf16>, vector<16x512xf32> -> vector<16x512xf32>
    %c0_28 = arith.constant 0 : index
    %c0_29 = arith.constant 0 : index
    %65 = vector.load %arg9[%c0_28, %c0_29] : memref<1x512xf32, #tpu.memory_space<vmem>>, vector<1x512xf32>
    %66 = vector.broadcast %65 : vector<1x512xf32> to vector<16x512xf32>
    %67 = arith.addf %64, %66 : vector<16x512xf32>
    %cst_30 = arith.constant 0.000000e+00 : f32
    %68 = vector.broadcast %cst_30 : f32 to vector<16x512xf32>
    %69 = arith.maximumf %67, %68 : vector<16x512xf32>
    %70 = arith.truncf %69 : vector<16x512xf32> to vector<16x512xbf16>
    %c0_31 = arith.constant 0 : index
    %c0_32 = arith.constant 0 : index
    %71 = vector.load %arg10[%c0_31, %c0_32] : memref<512x16xbf16, #tpu.memory_space<vmem>>, vector<512x16xbf16>
    %cst_33 = arith.constant dense<0.000000e+00> : vector<16x16xf32>
    %72 = tpu.matmul %70, %71, %cst_33 {dimension_numbers = #tpu.dot_dimension_numbers<[1], [0], [0], [1], [0, 0, 1, 1], [], []>} : vector<16x512xbf16>, vector<512x16xbf16>, vector<16x16xf32> -> vector<16x16xf32>
    %c0_34 = arith.constant 0 : index
    %c0_35 = arith.constant 0 : index
    %73 = vector.load %arg11[%c0_34, %c0_35] : memref<1x16xf32, #tpu.memory_space<vmem>>, vector<1x16xf32>
    %74 = vector.broadcast %73 : vector<1x16xf32> to vector<16x16xf32>
    %75 = arith.addf %72, %74 : vector<16x16xf32>
    %c0_36 = arith.constant 0 : index
    %c0_37 = arith.constant 0 : index
    %76 = vector.load %arg12[%c0_36, %c0_37] : memref<16x16xf32, #tpu.memory_space<vmem>>, vector<16x16xf32>
    tpu.vector_store %arg12[%c0_36, %c0_37], %75 {strides = array<i32>} : memref<16x16xf32, #tpu.memory_space<vmem>>, vector<16x16xf32>,
    return
  }
  func.func @transform_0(%arg0: i32) -> (i32, i32) {
    %c0_i32 = arith.constant 0 : i32
    %c0_i32_0 = arith.constant 0 : i32
    %c0_i32_1 = arith.constant 0 : i32
    return %c0_i32, %c0_i32_0 : i32, i32
  }
  func.func @transform_1(%arg0: i32) -> (i32, i32) {
    %c0_i32 = arith.constant 0 : i32
    %c0_i32_0 = arith.constant 0 : i32
    %c0_i32_1 = arith.constant 0 : i32
    return %c0_i32, %c0_i32_0 : i32, i32
  }
  func.func @transform_2(%arg0: i32) -> (i32, i32) {
    %c0_i32 = arith.constant 0 : i32
    %c0_i32_0 = arith.constant 0 : i32
    %c0_i32_1 = arith.constant 0 : i32
    return %c0_i32, %c0_i32_0 : i32, i32
  }
  func.func @transform_3(%arg0: i32) -> (i32, i32) {
    %c0_i32 = arith.constant 0 : i32
    %c0_i32_0 = arith.constant 0 : i32
    %c0_i32_1 = arith.constant 0 : i32
    return %c0_i32, %c0_i32_0 : i32, i32
  }
  func.func @transform_4(%arg0: i32) -> (i32, i32) {
    %c0_i32 = arith.constant 0 : i32
    %c0_i32_0 = arith.constant 0 : i32
    %c0_i32_1 = arith.constant 0 : i32
    return %c0_i32, %c0_i32_0 : i32, i32
  }
  func.func @transform_5(%arg0: i32) -> (i32, i32) {
    %c0_i32 = arith.constant 0 : i32
    %c0_i32_0 = arith.constant 0 : i32
    %c0_i32_1 = arith.constant 0 : i32
    return %c0_i32, %c0_i32_0 : i32, i32
  }
  func.func @transform_6(%arg0: i32) -> (i32, i32) {
    %c0_i32 = arith.constant 0 : i32
    %c0_i32_0 = arith.constant 0 : i32
    %c0_i32_1 = arith.constant 0 : i32
    return %c0_i32, %c0_i32_0 : i32, i32
  }
  func.func @transform_7(%arg0: i32) -> (i32, i32) {
    %c0_i32 = arith.constant 0 : i32
    %c0_i32_0 = arith.constant 0 : i32
    %c0_i32_1 = arith.constant 0 : i32
    return %c0_i32, %c0_i32_0 : i32, i32
  }
  func.func @transform_8(%arg0: i32) -> (i32, i32) {
    %c0_i32 = arith.constant 0 : i32
    %c0_i32_0 = arith.constant 0 : i32
    %c0_i32_1 = arith.constant 0 : i32
    return %c0_i32, %c0_i32_0 : i32, i32
  }
  func.func @transform_9(%arg0: i32) -> (i32, i32) {
    %c0_i32 = arith.constant 0 : i32
    %c0_i32_0 = arith.constant 0 : i32
    %c0_i32_1 = arith.constant 0 : i32
    return %c0_i32, %c0_i32_0 : i32, i32
  }
  func.func @transform_10(%arg0: i32) -> (i32, i32) {
    %c0_i32 = arith.constant 0 : i32
    %c0_i32_0 = arith.constant 0 : i32
    %c0_i32_1 = arith.constant 0 : i32
    return %c0_i32, %c0_i32_0 : i32, i32
  }
  func.func @transform_11(%arg0: i32) -> (i32, i32) {
    %c0_i32 = arith.constant 0 : i32
    %c0_i32_0 = arith.constant 0 : i32
    %c0_i32_1 = arith.constant 0 : i32
    return %c0_i32, %c0_i32_0 : i32, i32
  }
}

</mosaic_0001>

<llo_original>
// kernel: generator_forward.1
$region0: #{generator_forward.1}
  #allocation0 [shape = 'u32[]', space=smem, size = 0x4, offset = 0x4, fixed_abs, tag = 'smem constant byte address 0x4 - core index']
  #allocation1 [shape = 'u32[144,128]{1,0:T(1,128)}', space=vmem, size = 0x12000, scoped, tag = 'internal scratch']
  %s0 = inlined_call_operand.vmem [shape: f32[16,32], index: 0, kind: input, shape index: {}]
  %s1 = inlined_call_operand.vmem [shape: bf16[32,96], index: 1, kind: input, shape index: {}]
  %s2 = inlined_call_operand.vmem [shape: f32[1,96], index: 2, kind: input, shape index: {}]
  %s3 = inlined_call_operand.vmem [shape: bf16[32,32], index: 3, kind: input, shape index: {}]
  %s4 = inlined_call_operand.vmem [shape: f32[1,32], index: 4, kind: input, shape index: {}]
  %s5 = inlined_call_operand.vmem [shape: f32[1,32], index: 5, kind: input, shape index: {}]
  %s6 = inlined_call_operand.vmem [shape: f32[1,32], index: 6, kind: input, shape index: {}]
  %s7 = inlined_call_operand.vmem [shape: bf16[32,512], index: 7, kind: input, shape index: {}]
  %s8 = inlined_call_operand.vmem [shape: f32[1,512], index: 8, kind: input, shape index: {}]
  %s9 = inlined_call_operand.vmem [shape: bf16[512,16], index: 9, kind: input, shape index: {}]
  %s10 = inlined_call_operand.vmem [shape: f32[1,16], index: 10, kind: input, shape index: {}]
  %s11 = inlined_call_operand.hbm [shape: f32[16,16], index: 11, kind: output, shape index: {}]
  %s12 = sld [smem:[#allocation0]]
  $region54: #{generator_forward.1} parent=0
    _
  %s14 = ssub.s32 1, %s12
  %s15 = scalar_select 0, %s14, %s12
  $region1: #{generator_forward.1} parent=0
    #allocation2 [shape = 'u8[8192]{0}', space=vmem, size = 0x2000, scoped, tag = 'output window, operand 0, single buffered']
    #allocation3 [shape = 's32[1]{0}', space=sflag, size = 0x4, scoped, tag = 'scoped memory for generator_forward.1']
    %16 = vsyncpa [#allocation3], 0
    // Predicated region
    $region2: #{generator_forward.1} parent=1 // pred_check
      _
    $region3: #{generator_forward.1} parent=1 // pred_check_branch
      %18 = sbr.rel (0) target = $region5
    $region4: #{generator_forward.1} parent=1 // pred_region
      _
    $region5: #{generator_forward.1} parent=1 // pred_fallthru
      _
    // Predicated region
    $region6: #{generator_forward.1} parent=1 // pred_check
      _
    $region7: #{generator_forward.1} parent=1 // pred_check_branch
      %20 = sbr.rel (0) target = $region9
    $region8: #{generator_forward.1} parent=1 // pred_region
      _
    $region9: #{generator_forward.1} parent=1 // pred_fallthru
      _
    // Predicated region
    $region10: #{generator_forward.1} parent=1 // pred_check
      _
    $region11: #{generator_forward.1} parent=1 // pred_check_branch
      %22 = sbr.rel (0) target = $region13
    $region12: #{generator_forward.1} parent=1 // pred_region
      _
    $region13: #{generator_forward.1} parent=1 // pred_fallthru
      _
    // Predicated region
    $region14: #{generator_forward.1} parent=1 // pred_check
      _
    $region15: #{generator_forward.1} parent=1 // pred_check_branch
      %24 = sbr.rel (0) target = $region17
    $region16: #{generator_forward.1} parent=1 // pred_region
      _
    $region17: #{generator_forward.1} parent=1 // pred_fallthru
      _
    // Predicated region
    $region18: #{generator_forward.1} parent=1 // pred_check
      _
    $region19: #{generator_forward.1} parent=1 // pred_check_branch
      %26 = sbr.rel (0) target = $region21
    $region20: #{generator_forward.1} parent=1 // pred_region
      _
    $region21: #{generator_forward.1} parent=1 // pred_fallthru
      _
    // Predicated region
    $region22: #{generator_forward.1} parent=1 // pred_check
      _
    $region23: #{generator_forward.1} parent=1 // pred_check_branch
      %28 = sbr.rel (0) target = $region25
    $region24: #{generator_forward.1} parent=1 // pred_region
      _
    $region25: #{generator_forward.1} parent=1 // pred_fallthru
      _
    // Predicated region
    $region26: #{generator_forward.1} parent=1 // pred_check
      _
    $region27: #{generator_forward.1} parent=1 // pred_check_branch
      %30 = sbr.rel (0) target = $region29
    $region28: #{generator_forward.1} parent=1 // pred_region
      _
    $region29: #{generator_forward.1} parent=1 // pred_fallthru
      _
    // Predicated region
    $region30: #{generator_forward.1} parent=1 // pred_check
      _
    $region31: #{generator_forward.1} parent=1 // pred_check_branch
      %32 = sbr.rel (0) target = $region33
    $region32: #{generator_forward.1} parent=1 // pred_region
      _
    $region33: #{generator_forward.1} parent=1 // pred_fallthru
      _
    // Predicated region
    $region34: #{generator_forward.1} parent=1 // pred_check
      _
    $region35: #{generator_forward.1} parent=1 // pred_check_branch
      %34 = sbr.rel (0) target = $region37
    $region36: #{generator_forward.1} parent=1 // pred_region
      _
    $region37: #{generator_forward.1} parent=1 // pred_fallthru
      _
    // Predicated region
    $region38: #{generator_forward.1} parent=1 // pred_check
      _
    $region39: #{generator_forward.1} parent=1 // pred_check_branch
      %36 = sbr.rel (0) target = $region41
    $region40: #{generator_forward.1} parent=1 // pred_region
      _
    $region41: #{generator_forward.1} parent=1 // pred_fallthru
      _
    // Predicated region
    $region42: #{generator_forward.1} parent=1 // pred_check
      _
    $region43: #{generator_forward.1} parent=1 // pred_check_branch
      %38 = sbr.rel (0) target = $region45
    $region44: #{generator_forward.1} parent=1 // pred_region
      _
    $region45: #{generator_forward.1} parent=1 // pred_fallthru
      _
    %v40 = vld [vmem:[%s0] sm:$0xff]
    %v41 = vld [vmem:[%s0 + $0x8] sm:$0xff]
    %v42 = vpack.c.bf16 %v41, %v40
    %v43 = vld [vmem:[%s1] sm:$0xf]
    %v44 = vld [vmem:[%s1 + $0x4] sm:$0xf]
    %v45 = vld [vmem:[%s1 + $0x8] sm:$0xf]
    %v46 = vld [vmem:[%s1 + $0xc] sm:$0xf]
    %v47 = vld [vmem:[%s2] sm:$0x1]
    %v49 = vlaneseq
    %v50 = vshrl.u32 %v49, 7
    %v51 = vsub.s32 0, %v50
    %v52 = vrot.slane %v47, %v51
    %v58 = vunpack.c.l.b16 %v43
    %v59 = vunpack.c.l.b16 %v44
    %v60 = vunpack.c.l.b16 %v45
    %v61 = vunpack.c.l.b16 %v46
    %v62 = vpack.c.b16 %v59, %v58
    %v63 = vpack.c.b16 %v61, %v60
    %vm66 = vcmask 261120
    %v68 = vsel %vm66, %v42, 0
    %70 = vmatprep.subr.bf16.mxu0 0
    %71 = vmatpush1.bf16.msra.mxu0 0
    %72 = vmatprep.subr.bf16.mxu0 0
    %73 = vmatpush1.bf16.msra.mxu0 0
    %74 = vmatprep.subr.bf16.mxu0 0
    %75 = vmatpush1.bf16.msra.mxu0 0
    %76 = vmatprep.subr.bf16.mxu0 0
    %77 = vmatpush1.bf16.msra.mxu0 0
    %78 = vmatprep.subr.bf16.mxu0 0
    %79 = vmatpush1.bf16.msra.mxu0 0
    %80 = vmatprep.subr.bf16.mxu0 0
    %81 = vmatpush1.bf16.msra.mxu0 0
    %82 = vmatprep.subr.bf16.mxu0 0
    %83 = vmatpush1.bf16.msra.mxu0 %v63
    %84 = vmatprep.subr.bf16.mxu0 0
    %85 = vmatpush1.bf16.msra.mxu0 %v62
    %86 = vmatprep.subr.bf16.mxu0 0
    %87 = vmatpush2.bf16.msra.mxu0 0
    %88 = vmatprep.subr.bf16.mxu0 0
    %89 = vmatpush2.bf16.msra.mxu0 0
    %90 = vmatprep.subr.bf16.mxu0 0
    %91 = vmatpush2.bf16.msra.mxu0 0
    %92 = vmatprep.subr.bf16.mxu0 0
    %93 = vmatpush2.bf16.msra.mxu0 0
    %94 = vmatprep.subr.bf16.mxu0 0
    %95 = vmatpush2.bf16.msra.mxu0 0
    %96 = vmatprep.subr.bf16.mxu0 0
    %97 = vmatpush2.bf16.msra.mxu0 0
    %98 = vmatprep.subr.bf16.mxu0 0
    %99 = vmatpush2.bf16.msra.mxu0 0
    %100 = vmatprep.subr.bf16.mxu0 0
    %101 = vmatpush2.bf16.msra.mxu0 0
    %102 = vmatprep.mubr.bf16.mxu0 0
    %103 = vmatmul.mubr.bf16.gmra.mxu0 %v68
    %v104 = vpop.f32.mrf.mxu0
    %v105 = vadd.f32 %v52, %v104
    %v106 = vpop.f32.mrf.mxu0
    %v107 = vpop.f32.mrf.mxu0
    %v108 = vadd.f32 %v52, %v107
    %v109 = vpop.f32.mrf.mxu0
    %110 = vdwg.mxu0
    %v111 = vpack.c.bf16 %v108, %v105
    %113 = vrot.lane.b32.xlu0 %v111, 96
    %v114 = vpop.permute.xlu0 %113
    %v116 = vsel %vm66, %v111, 0
    %v119 = vsel %vm66, %v114, 0
    %121 = vmatprep.subr.bf16.mxu0 0
    %122 = vmatpush1.bf16.xpose.msra.mxu0 0
    %123 = vmatprep.subr.bf16.mxu0 0
    %124 = vmatpush1.bf16.xpose.msra.mxu0 0
    %125 = vmatprep.subr.bf16.mxu0 0
    %126 = vmatpush1.bf16.xpose.msra.mxu0 0
    %127 = vmatprep.subr.bf16.mxu0 0
    %128 = vmatpush1.bf16.xpose.msra.mxu0 0
    %129 = vmatprep.subr.bf16.mxu0 0
    %130 = vmatpush1.bf16.xpose.msra.mxu0 0
    %131 = vmatprep.subr.bf16.mxu0 0
    %132 = vmatpush1.bf16.xpose.msra.mxu0 0
    %133 = vmatprep.subr.bf16.mxu0 0
    %134 = vmatpush1.bf16.xpose.msra.mxu0 0
    %135 = vmatprep.subr.bf16.mxu0 0
    %136 = vmatpush1.bf16.xpose.msra.mxu0 %v119
    %137 = vmatprep.subr.bf16.mxu0 0
    %138 = vmatpush2.bf16.xpose.msra.mxu0 0
    %139 = vmatprep.subr.bf16.mxu0 0
    %140 = vmatpush2.bf16.xpose.msra.mxu0 0
    %141 = vmatprep.subr.bf16.mxu0 0
    %142 = vmatpush2.bf16.xpose.msra.mxu0 0
    %143 = vmatprep.subr.bf16.mxu0 0
    %144 = vmatpush2.bf16.xpose.msra.mxu0 0
    %145 = vmatprep.subr.bf16.mxu0 0
    %146 = vmatpush2.bf16.xpose.msra.mxu0 0
    %147 = vmatprep.subr.bf16.mxu0 0
    %148 = vmatpush2.bf16.xpose.msra.mxu0 0
    %149 = vmatprep.subr.bf16.mxu0 0
    %150 = vmatpush2.bf16.xpose.msra.mxu0 0
    %151 = vmatprep.subr.bf16.mxu0 0
    %152 = vmatpush2.bf16.xpose.msra.mxu0 0
    %153 = vmatprep.mubr.bf16.mxu0 0
    %154 = vmatmul.mubr.bf16.gmra.mxu0 %v116
    %v155 = vpop.f32.mrf.mxu0
    %v156 = vadd.f32 0.0, %v155
    %v157 = vpop.f32.mrf.mxu0
    %v158 = vpop.f32.mrf.mxu0
    %v159 = vadd.f32 0.0, %v158
    %v160 = vpop.f32.mrf.mxu0
    %161 = vdwg.mxu0
    %v162 = vlaneseq
    %v163 = vshrl.u32 %v162, 7
    %v164 = vadd.s32 %v163, 8
    %v165 = vlaneseq
    %v166 = vand.u32 %v165, 127
    %v167 = vand.u32 %v163, 1
    %v168 = vand.u32 %v164, 1
    %v169 = vand.u32 %v166, 1
    %vm170 = vcmp.eq.s32.totalorder %v167, %v169
    %vm171 = vcmp.eq.s32.totalorder %v168, %v169
    %v172 = vsel %vm170, %v156, -1e+30
    %v173 = vsel %vm171, %v159, -1e+30
    %vm174 = vcmask 130048
    %v175 = vsel %vm174, %v172, -inf
    %176 = vmax.xlane.f32.xlu0 %v175
    %v177 = vpop.xlane.xlu0 %176
    %v178 = vsel %vm174, %v173, -inf
    %179 = vmax.xlane.f32.xlu0 %v178
    %v180 = vpop.xlane.xlu0 %179
    %v181 = vsub.f32 %v172, %v177
    %v182 = vsub.f32 %v173, %v180
    %v183 = vmul.f32 %v181, 1.442695
    %v184 = vpow.pop %v183
    %v185 = vmul.f32 %v182, 1.442695
    %v186 = vpow.pop %v185
    %v187 = vsel %vm174, %v184, 0.0
    %188 = vadd.xlane.f32.xlu0 %v187
    %v189 = vpop.xlane.xlu0 %188
    %v190 = vsel %vm174, %v186, 0.0
    %191 = vadd.xlane.f32.xlu0 %v190
    %v192 = vpop.xlane.xlu0 %191
    %v193 = vrcp.pop %v189
    %v194 = vmul.f32 %v184, %v193
    %v195 = vrcp.pop %v192
    %v196 = vmul.f32 %v186, %v195
    %v197 = vpack.c.bf16 %v196, %v194
    %198 = vrot.lane.b32.xlu0 %v111, 64
    %v199 = vpop.permute.xlu0 %198
    %v202 = vsel %vm174, %v197, 0
    %204 = vmatprep.subr.bf16.mxu0 0
    %205 = vmatpush1.bf16.msra.mxu0 0
    %206 = vmatprep.subr.bf16.mxu0 0
    %207 = vmatpush1.bf16.msra.mxu0 0
    %208 = vmatprep.subr.bf16.mxu0 0
    %209 = vmatpush1.bf16.msra.mxu0 0
    %210 = vmatprep.subr.bf16.mxu0 0
    %211 = vmatpush1.bf16.msra.mxu0 0
    %212 = vmatprep.subr.bf16.mxu0 0
    %213 = vmatpush1.bf16.msra.mxu0 0
    %214 = vmatprep.subr.bf16.mxu0 0
    %215 = vmatpush1.bf16.msra.mxu0 0
    %216 = vmatprep.subr.bf16.mxu0 0
    %217 = vmatpush1.bf16.msra.mxu0 0
    %218 = vmatprep.subr.bf16.mxu0 0
    %219 = vmatpush1.bf16.msra.mxu0 %v199
    %220 = vmatprep.subr.bf16.mxu0 0
    %221 = vmatpush2.bf16.msra.mxu0 0
    %222 = vmatprep.subr.bf16.mxu0 0
    %223 = vmatpush2.bf16.msra.mxu0 0
    %224 = vmatprep.subr.bf16.mxu0 0
    %225 = vmatpush2.bf16.msra.mxu0 0
    %226 = vmatprep.subr.bf16.mxu0 0
    %227 = vmatpush2.bf16.msra.mxu0 0
    %228 = vmatprep.subr.bf16.mxu0 0
    %229 = vmatpush2.bf16.msra.mxu0 0
    %230 = vmatprep.subr.bf16.mxu0 0
    %231 = vmatpush2.bf16.msra.mxu0 0
    %232 = vmatprep.subr.bf16.mxu0 0
    %233 = vmatpush2.bf16.msra.mxu0 0
    %234 = vmatprep.subr.bf16.mxu0 0
    %235 = vmatpush2.bf16.msra.mxu0 0
    %236 = vmatprep.mubr.bf16.mxu0 0
    %237 = vmatmul.mubr.bf16.gmra.mxu0 %v202
    %v238 = vpop.f32.mrf.mxu0
    %v239 = vadd.f32 0.0, %v238
    %v240 = vpop.f32.mrf.mxu0
    %v241 = vpop.f32.mrf.mxu0
    %v242 = vadd.f32 0.0, %v241
    %v243 = vpop.f32.mrf.mxu0
    %244 = vdwg.mxu0
    %v245 = vpack.c.bf16 %v242, %v239
    %v246 = vld [vmem:[%s3] sm:$0xf]
    %v247 = vld [vmem:[%s3 + $0x4] sm:$0xf]
    %v248 = vld [vmem:[%s3 + $0x8] sm:$0xf]
    %v249 = vld [vmem:[%s3 + $0xc] sm:$0xf]
    %v250 = vld [vmem:[%s4] sm:$0x1]
    %v252 = vlaneseq
    %v253 = vshrl.u32 %v252, 7
    %v254 = vsub.s32 0, %v253
    %v255 = vrot.slane %v250, %v254
    %v261 = vunpack.c.l.b16 %v246
    %v262 = vunpack.c.l.b16 %v247
    %v263 = vunpack.c.l.b16 %v248
    %v264 = vunpack.c.l.b16 %v249
    %v265 = vpack.c.b16 %v262, %v261
    %v266 = vpack.c.b16 %v264, %v263
    %v270 = vsel %vm66, %v245, 0
    %272 = vmatprep.subr.bf16.mxu0 0
    %273 = vmatpush1.bf16.msra.mxu0 0
    %274 = vmatprep.subr.bf16.mxu0 0
    %275 = vmatpush1.bf16.msra.mxu0 0
    %276 = vmatprep.subr.bf16.mxu0 0
    %277 = vmatpush1.bf16.msra.mxu0 0
    %278 = vmatprep.subr.bf16.mxu0 0
    %279 = vmatpush1.bf16.msra.mxu0 0
    %280 = vmatprep.subr.bf16.mxu0 0
    %281 = vmatpush1.bf16.msra.mxu0 0
    %282 = vmatprep.subr.bf16.mxu0 0
    %283 = vmatpush1.bf16.msra.mxu0 0
    %284 = vmatprep.subr.bf16.mxu0 0
    %285 = vmatpush1.bf16.msra.mxu0 %v266
    %286 = vmatprep.subr.bf16.mxu0 0
    %287 = vmatpush1.bf16.msra.mxu0 %v265
    %288 = vmatprep.subr.bf16.mxu0 0
    %289 = vmatpush2.bf16.msra.mxu0 0
    %290 = vmatprep.subr.bf16.mxu0 0
    %291 = vmatpush2.bf16.msra.mxu0 0
    %292 = vmatprep.subr.bf16.mxu0 0
    %293 = vmatpush2.bf16.msra.mxu0 0
    %294 = vmatprep.subr.bf16.mxu0 0
    %295 = vmatpush2.bf16.msra.mxu0 0
    %296 = vmatprep.subr.bf16.mxu0 0
    %297 = vmatpush2.bf16.msra.mxu0 0
    %298 = vmatprep.subr.bf16.mxu0 0
    %299 = vmatpush2.bf16.msra.mxu0 0
    %300 = vmatprep.subr.bf16.mxu0 0
    %301 = vmatpush2.bf16.msra.mxu0 0
    %302 = vmatprep.subr.bf16.mxu0 0
    %303 = vmatpush2.bf16.msra.mxu0 0
    %304 = vmatprep.mubr.bf16.mxu0 0
    %305 = vmatmul.mubr.bf16.gmra.mxu0 %v270
    %v306 = vpop.f32.mrf.mxu0
    %v307 = vadd.f32 %v255, %v306
    %v308 = vpop.f32.mrf.mxu0
    %v309 = vpop.f32.mrf.mxu0
    %v310 = vadd.f32 %v255, %v309
    %v311 = vpop.f32.mrf.mxu0
    %312 = vdwg.mxu0
    %v313 = vsel %vm66, %v307, 0.0
    %314 = vadd.xlane.f32.xlu0 %v313
    %v315 = vpop.xlane.xlu0 %314
    %v316 = vsel %vm66, %v310, 0.0
    %317 = vadd.xlane.f32.xlu0 %v316
    %v318 = vpop.xlane.xlu0 %317
    %v319 = vrcp.pop 32.0
    %v320 = vmul.f32 %v315, %v319
    %v321 = vmul.f32 %v318, %v319
    %v322 = vsub.f32 %v307, %v320
    %v323 = vsub.f32 %v310, %v321
    %v324 = vmul.f32 %v322, %v322
    %v325 = vmul.f32 %v323, %v323
    %v326 = vsel %vm66, %v324, 0.0
    %327 = vadd.xlane.f32.xlu0 %v326
    %v328 = vpop.xlane.xlu0 %327
    %v329 = vsel %vm66, %v325, 0.0
    %330 = vadd.xlane.f32.xlu0 %v329
    %v331 = vpop.xlane.xlu0 %330
    %v332 = vmul.f32 %v328, %v319
    %v333 = vmul.f32 %v331, %v319
    %v334 = vadd.f32 %v332, 1e-05
    %v335 = vadd.f32 %v333, 1e-05
    %v336 = vrsqrt.pop %v334
    %v337 = vrsqrt.pop %v335
    %v338 = vmul.f32 %v322, %v336
    %v339 = vmul.f32 %v323, %v337
    %v340 = vld [vmem:[%s5] sm:$0x1]
    %v342 = vlaneseq
    %v343 = vshrl.u32 %v342, 7
    %v344 = vsub.s32 0, %v343
    %v345 = vrot.slane %v340, %v344
    %v347 = vmul.f32 %v338, %v345
    %v348 = vmul.f32 %v339, %v345
    %v349 = vld [vmem:[%s6] sm:$0x1]
    %v351 = vlaneseq
    %v352 = vshrl.u32 %v351, 7
    %v353 = vsub.s32 0, %v352
    %v354 = vrot.slane %v349, %v353
    %v356 = vadd.f32 %v347, %v354
    %v357 = vadd.f32 %v348, %v354
    %v358 = vpack.c.bf16 %v357, %v356
    %v359 = vld [vmem:[%s7] sm:$0xff]
    %v360 = vld [vmem:[%s7 + $0x8] sm:$0xff]
    %v361 = vld [vmem:[%s7 + $0x10] sm:$0xff]
    %v362 = vld [vmem:[%s7 + $0x18] sm:$0xff]
    %v363 = vld [vmem:[%s7 + $0x20] sm:$0xff]
    %v364 = vld [vmem:[%s7 + $0x28] sm:$0xff]
    %v365 = vld [vmem:[%s7 + $0x30] sm:$0xff]
    %v366 = vld [vmem:[%s7 + $0x38] sm:$0xff]
    %v367 = vld [vmem:[%s8] sm:$0xf]
    %v369 = vlaneseq
    %v370 = vshrl.u32 %v369, 7
    %v371 = vsub.s32 0, %v370
    %v372 = vrot.slane %v367, %v371
    %v373 = vlaneseq
    %v374 = vshrl.u32 %v373, 7
    %v375 = vsub.s32 1, %v374
    %v376 = vrot.slane %v367, %v375
    %v377 = vlaneseq
    %v378 = vshrl.u32 %v377, 7
    %v379 = vsub.s32 2, %v378
    %v380 = vrot.slane %v367, %v379
    %v381 = vlaneseq
    %v382 = vshrl.u32 %v381, 7
    %v383 = vsub.s32 3, %v382
    %v384 = vrot.slane %v367, %v383
    %v397 = vunpack.c.l.b16 %v359
    %v398 = vunpack.c.h.b16 %v359
    %v399 = vunpack.c.l.b16 %v360
    %v400 = vunpack.c.h.b16 %v360
    %v401 = vunpack.c.l.b16 %v361
    %v402 = vunpack.c.h.b16 %v361
    %v403 = vunpack.c.l.b16 %v362
    %v404 = vunpack.c.h.b16 %v362
    %v405 = vunpack.c.l.b16 %v363
    %v406 = vunpack.c.h.b16 %v363
    %v407 = vunpack.c.l.b16 %v364
    %v408 = vunpack.c.h.b16 %v364
    %v409 = vunpack.c.l.b16 %v365
    %v410 = vunpack.c.h.b16 %v365
    %v411 = vunpack.c.l.b16 %v366
    %v412 = vunpack.c.h.b16 %v366
    %v413 = vpack.c.b16 %v401, %v397
    %v414 = vpack.c.b16 %v402, %v398
    %v415 = vpack.c.b16 %v403, %v399
    %v416 = vpack.c.b16 %v404, %v400
    %v417 = vpack.c.b16 %v409, %v405
    %v418 = vpack.c.b16 %v410, %v406
    %v419 = vpack.c.b16 %v411, %v407
    %v420 = vpack.c.b16 %v412, %v408
    %v430 = vsel %vm66, %v358, 0
    %432 = vmatprep.subr.bf16.mxu0 0
    %433 = vmatpush1.bf16.msra.mxu0 0
    %434 = vmatprep.subr.bf16.mxu0 0
    %435 = vmatpush1.bf16.msra.mxu0 0
    %436 = vmatprep.subr.bf16.mxu0 0
    %437 = vmatpush1.bf16.msra.mxu0 0
    %438 = vmatprep.subr.bf16.mxu0 0
    %439 = vmatpush1.bf16.msra.mxu0 0
    %440 = vmatprep.subr.bf16.mxu0 0
    %441 = vmatpush1.bf16.msra.mxu0 0
    %442 = vmatprep.subr.bf16.mxu0 0
    %443 = vmatpush1.bf16.msra.mxu0 0
    %444 = vmatprep.subr.bf16.mxu0 %v418
    %445 = vmatpush1.bf16.msra.mxu0 %v417
    %446 = vmatprep.subr.bf16.mxu0 %v414
    %447 = vmatpush1.bf16.msra.mxu0 %v413
    %448 = vmatprep.subr.bf16.mxu0 0
    %449 = vmatpush2.bf16.msra.mxu0 0
    %450 = vmatprep.subr.bf16.mxu0 0
    %451 = vmatpush2.bf16.msra.mxu0 0
    %452 = vmatprep.subr.bf16.mxu0 0
    %453 = vmatpush2.bf16.msra.mxu0 0
    %454 = vmatprep.subr.bf16.mxu0 0
    %455 = vmatpush2.bf16.msra.mxu0 0
    %456 = vmatprep.subr.bf16.mxu0 0
    %457 = vmatpush2.bf16.msra.mxu0 0
    %458 = vmatprep.subr.bf16.mxu0 0
    %459 = vmatpush2.bf16.msra.mxu0 0
    %460 = vmatprep.subr.bf16.mxu0 0
    %461 = vmatpush2.bf16.msra.mxu0 0
    %462 = vmatprep.subr.bf16.mxu0 0
    %463 = vmatpush2.bf16.msra.mxu0 0
    %464 = vmatprep.mubr.bf16.mxu0 0
    %465 = vmatmul.mubr.bf16.gmra.mxu0 %v430
    %v466 = vpop.f32.mrf.mxu0
    %v467 = vadd.f32 %v372, %v466
    %v468 = vpop.f32.mrf.mxu0
    %v469 = vadd.f32 %v376, %v468
    %v470 = vpop.f32.mrf.mxu0
    %v471 = vadd.f32 %v372, %v470
    %v472 = vpop.f32.mrf.mxu0
    %v473 = vadd.f32 %v376, %v472
    %474 = vdwg.mxu0
    %475 = vmatprep.subr.bf16.mxu0 0
    %476 = vmatpush1.bf16.msra.mxu0 0
    %477 = vmatprep.subr.bf16.mxu0 0
    %478 = vmatpush1.bf16.msra.mxu0 0
    %479 = vmatprep.subr.bf16.mxu0 0
    %480 = vmatpush1.bf16.msra.mxu0 0
    %481 = vmatprep.subr.bf16.mxu0 0
    %482 = vmatpush1.bf16.msra.mxu0 0
    %483 = vmatprep.subr.bf16.mxu0 0
    %484 = vmatpush1.bf16.msra.mxu0 0
    %485 = vmatprep.subr.bf16.mxu0 0
    %486 = vmatpush1.bf16.msra.mxu0 0
    %487 = vmatprep.subr.bf16.mxu0 %v420
    %488 = vmatpush1.bf16.msra.mxu0 %v419
    %489 = vmatprep.subr.bf16.mxu0 %v416
    %490 = vmatpush1.bf16.msra.mxu0 %v415
    %491 = vmatprep.subr.bf16.mxu0 0
    %492 = vmatpush2.bf16.msra.mxu0 0
    %493 = vmatprep.subr.bf16.mxu0 0
    %494 = vmatpush2.bf16.msra.mxu0 0
    %495 = vmatprep.subr.bf16.mxu0 0
    %496 = vmatpush2.bf16.msra.mxu0 0
    %497 = vmatprep.subr.bf16.mxu0 0
    %498 = vmatpush2.bf16.msra.mxu0 0
    %499 = vmatprep.subr.bf16.mxu0 0
    %500 = vmatpush2.bf16.msra.mxu0 0
    %501 = vmatprep.subr.bf16.mxu0 0
    %502 = vmatpush2.bf16.msra.mxu0 0
    %503 = vmatprep.subr.bf16.mxu0 0
    %504 = vmatpush2.bf16.msra.mxu0 0
    %505 = vmatprep.subr.bf16.mxu0 0
    %506 = vmatpush2.bf16.msra.mxu0 0
    %507 = vmatprep.mubr.bf16.mxu0 0
    %508 = vmatmul.mubr.bf16.gmra.mxu0 %v430
    %v509 = vpop.f32.mrf.mxu0
    %v510 = vadd.f32 %v380, %v509
    %v511 = vpop.f32.mrf.mxu0
    %v512 = vadd.f32 %v384, %v511
    %v513 = vpop.f32.mrf.mxu0
    %v514 = vadd.f32 %v380, %v513
    %v515 = vpop.f32.mrf.mxu0
    %v516 = vadd.f32 %v384, %v515
    %517 = vdwg.mxu0
    %v518 = vmax.f32 %v467, 0.0
    %v519 = vmax.f32 %v469, 0.0
    %v520 = vmax.f32 %v510, 0.0
    %v521 = vmax.f32 %v512, 0.0
    %v522 = vmax.f32 %v471, 0.0
    %v523 = vmax.f32 %v473, 0.0
    %v524 = vmax.f32 %v514, 0.0
    %v525 = vmax.f32 %v516, 0.0
    %v526 = vpack.c.bf16 %v522, %v518
    %v527 = vpack.c.bf16 %v523, %v519
    %v528 = vpack.c.bf16 %v524, %v520
    %v529 = vpack.c.bf16 %v525, %v521
    %v530 = vld [vmem:[%s9] sm:$0xf]
    %v531 = vld [vmem:[%s9 + $0x4] sm:$0xf]
    %v532 = vld [vmem:[%s9 + $0x8] sm:$0xf]
    %v533 = vld [vmem:[%s9 + $0xc] sm:$0xf]
    %v534 = vld [vmem:[%s9 + $0x10] sm:$0xf]
    %v535 = vld [vmem:[%s9 + $0x14] sm:$0xf]
    %v536 = vld [vmem:[%s9 + $0x18] sm:$0xf]
    %v537 = vld [vmem:[%s9 + $0x1c] sm:$0xf]
    %v538 = vld [vmem:[%s9 + $0x20] sm:$0xf]
    %v539 = vld [vmem:[%s9 + $0x24] sm:$0xf]
    %v540 = vld [vmem:[%s9 + $0x28] sm:$0xf]
    %v541 = vld [vmem:[%s9 + $0x2c] sm:$0xf]
    %v542 = vld [vmem:[%s9 + $0x30] sm:$0xf]
    %v543 = vld [vmem:[%s9 + $0x34] sm:$0xf]
    %v544 = vld [vmem:[%s9 + $0x38] sm:$0xf]
    %v545 = vld [vmem:[%s9 + $0x3c] sm:$0xf]
    %v546 = vld [vmem:[%s9 + $0x40] sm:$0xf]
    %v547 = vld [vmem:[%s9 + $0x44] sm:$0xf]
    %v548 = vld [vmem:[%s9 + $0x48] sm:$0xf]
    %v549 = vld [vmem:[%s9 + $0x4c] sm:$0xf]
    %v550 = vld [vmem:[%s9 + $0x50] sm:$0xf]
    %v551 = vld [vmem:[%s9 + $0x54] sm:$0xf]
    %v552 = vld [vmem:[%s9 + $0x58] sm:$0xf]
    %v553 = vld [vmem:[%s9 + $0x5c] sm:$0xf]
    %v554 = vld [vmem:[%s9 + $0x60] sm:$0xf]
    %v555 = vld [vmem:[%s9 + $0x64] sm:$0xf]
    %v556 = vld [vmem:[%s9 + $0x68] sm:$0xf]
    %v557 = vld [vmem:[%s9 + $0x6c] sm:$0xf]
    %v558 = vld [vmem:[%s9 + $0x70] sm:$0xf]
    %v559 = vld [vmem:[%s9 + $0x74] sm:$0xf]
    %v560 = vld [vmem:[%s9 + $0x78] sm:$0xf]
    %v561 = vld [vmem:[%s9 + $0x7c] sm:$0xf]
    %v562 = vld [vmem:[%s9 + $0x80] sm:$0xf]
    %v563 = vld [vmem:[%s9 + $0x84] sm:$0xf]
    %v564 = vld [vmem:[%s9 + $0x88] sm:$0xf]
    %v565 = vld [vmem:[%s9 + $0x8c] sm:$0xf]
    %v566 = vld [vmem:[%s9 + $0x90] sm:$0xf]
    %v567 = vld [vmem:[%s9 + $0x94] sm:$0xf]
    %v568 = vld [vmem:[%s9 + $0x98] sm:$0xf]
    %v569 = vld [vmem:[%s9 + $0x9c] sm:$0xf]
    %v570 = vld [vmem:[%s9 + $0xa0] sm:$0xf]
    %v571 = vld [vmem:[%s9 + $0xa4] sm:$0xf]
    %v572 = vld [vmem:[%s9 + $0xa8] sm:$0xf]
    %v573 = vld [vmem:[%s9 + $0xac] sm:$0xf]
    %v574 = vld [vmem:[%s9 + $0xb0] sm:$0xf]
    %v575 = vld [vmem:[%s9 + $0xb4] sm:$0xf]
    %v576 = vld [vmem:[%s9 + $0xb8] sm:$0xf]
    %v577 = vld [vmem:[%s9 + $0xbc] sm:$0xf]
    %v578 = vld [vmem:[%s9 + $0xc0] sm:$0xf]
    %v579 = vld [vmem:[%s9 + $0xc4] sm:$0xf]
    %v580 = vld [vmem:[%s9 + $0xc8] sm:$0xf]
    %v581 = vld [vmem:[%s9 + $0xcc] sm:$0xf]
    %v582 = vld [vmem:[%s9 + $0xd0] sm:$0xf]
    %v583 = vld [vmem:[%s9 + $0xd4] sm:$0xf]
    %v584 = vld [vmem:[%s9 + $0xd8] sm:$0xf]
    %v585 = vld [vmem:[%s9 + $0xdc] sm:$0xf]
    %v586 = vld [vmem:[%s9 + $0xe0] sm:$0xf]
    %v587 = vld [vmem:[%s9 + $0xe4] sm:$0xf]
    %v588 = vld [vmem:[%s9 + $0xe8] sm:$0xf]
    %v589 = vld [vmem:[%s9 + $0xec] sm:$0xf]
    %v590 = vld [vmem:[%s9 + $0xf0] sm:$0xf]
    %v591 = vld [vmem:[%s9 + $0xf4] sm:$0xf]
    %v592 = vld [vmem:[%s9 + $0xf8] sm:$0xf]
    %v593 = vld [vmem:[%s9 + $0xfc] sm:$0xf]
    %v594 = vld [vmem:[%s10] sm:$0x1]
    %v596 = vlaneseq
    %v597 = vshrl.u32 %v596, 7
    %v598 = vsub.s32 0, %v597
    %v599 = vrot.slane %v594, %v598
    %v665 = vunpack.c.l.b16 %v530
    %v666 = vunpack.c.l.b16 %v531
    %v667 = vunpack.c.l.b16 %v532
    %v668 = vunpack.c.l.b16 %v533
    %v669 = vunpack.c.l.b16 %v534
    %v670 = vunpack.c.l.b16 %v535
    %v671 = vunpack.c.l.b16 %v536
    %v672 = vunpack.c.l.b16 %v537
    %v673 = vunpack.c.l.b16 %v538
    %v674 = vunpack.c.l.b16 %v539
    %v675 = vunpack.c.l.b16 %v540
    %v676 = vunpack.c.l.b16 %v541
    %v677 = vunpack.c.l.b16 %v542
    %v678 = vunpack.c.l.b16 %v543
    %v679 = vunpack.c.l.b16 %v544
    %v680 = vunpack.c.l.b16 %v545
    %v681 = vunpack.c.l.b16 %v546
    %v682 = vunpack.c.l.b16 %v547
    %v683 = vunpack.c.l.b16 %v548
    %v684 = vunpack.c.l.b16 %v549
    %v685 = vunpack.c.l.b16 %v550
    %v686 = vunpack.c.l.b16 %v551
    %v687 = vunpack.c.l.b16 %v552
    %v688 = vunpack.c.l.b16 %v553
    %v689 = vunpack.c.l.b16 %v554
    %v690 = vunpack.c.l.b16 %v555
    %v691 = vunpack.c.l.b16 %v556
    %v692 = vunpack.c.l.b16 %v557
    %v693 = vunpack.c.l.b16 %v558
    %v694 = vunpack.c.l.b16 %v559
    %v695 = vunpack.c.l.b16 %v560
    %v696 = vunpack.c.l.b16 %v561
    %v697 = vunpack.c.l.b16 %v562
    %v698 = vunpack.c.l.b16 %v563
    %v699 = vunpack.c.l.b16 %v564
    %v700 = vunpack.c.l.b16 %v565
    %v701 = vunpack.c.l.b16 %v566
    %v702 = vunpack.c.l.b16 %v567
    %v703 = vunpack.c.l.b16 %v568
    %v704 = vunpack.c.l.b16 %v569
    %v705 = vunpack.c.l.b16 %v570
    %v706 = vunpack.c.l.b16 %v571
    %v707 = vunpack.c.l.b16 %v572
    %v708 = vunpack.c.l.b16 %v573
    %v709 = vunpack.c.l.b16 %v574
    %v710 = vunpack.c.l.b16 %v575
    %v711 = vunpack.c.l.b16 %v576
    %v712 = vunpack.c.l.b16 %v577
    %v713 = vunpack.c.l.b16 %v578
    %v714 = vunpack.c.l.b16 %v579
    %v715 = vunpack.c.l.b16 %v580
    %v716 = vunpack.c.l.b16 %v581
    %v717 = vunpack.c.l.b16 %v582
    %v718 = vunpack.c.l.b16 %v583
    %v719 = vunpack.c.l.b16 %v584
    %v720 = vunpack.c.l.b16 %v585
    %v721 = vunpack.c.l.b16 %v586
    %v722 = vunpack.c.l.b16 %v587
    %v723 = vunpack.c.l.b16 %v588
    %v724 = vunpack.c.l.b16 %v589
    %v725 = vunpack.c.l.b16 %v590
    %v726 = vunpack.c.l.b16 %v591
    %v727 = vunpack.c.l.b16 %v592
    %v728 = vunpack.c.l.b16 %v593
    %v729 = vpack.c.b16 %v666, %v665
    %v730 = vpack.c.b16 %v668, %v667
    %v731 = vpack.c.b16 %v670, %v669
    %v732 = vpack.c.b16 %v672, %v671
    %v733 = vpack.c.b16 %v674, %v673
    %v734 = vpack.c.b16 %v676, %v675
    %v735 = vpack.c.b16 %v678, %v677
    %v736 = vpack.c.b16 %v680, %v679
    %v737 = vpack.c.b16 %v682, %v681
    %v738 = vpack.c.b16 %v684, %v683
    %v739 = vpack.c.b16 %v686, %v685
    %v740 = vpack.c.b16 %v688, %v687
    %v741 = vpack.c.b16 %v690, %v689
    %v742 = vpack.c.b16 %v692, %v691
    %v743 = vpack.c.b16 %v694, %v693
    %v744 = vpack.c.b16 %v696, %v695
    %v745 = vpack.c.b16 %v698, %v697
    %v746 = vpack.c.b16 %v700, %v699
    %v747 = vpack.c.b16 %v702, %v701
    %v748 = vpack.c.b16 %v704, %v703
    %v749 = vpack.c.b16 %v706, %v705
    %v750 = vpack.c.b16 %v708, %v707
    %v751 = vpack.c.b16 %v710, %v709
    %v752 = vpack.c.b16 %v712, %v711
    %v753 = vpack.c.b16 %v714, %v713
    %v754 = vpack.c.b16 %v716, %v715
    %v755 = vpack.c.b16 %v718, %v717
    %v756 = vpack.c.b16 %v720, %v719
    %v757 = vpack.c.b16 %v722, %v721
    %v758 = vpack.c.b16 %v724, %v723
    %v759 = vpack.c.b16 %v726, %v725
    %v760 = vpack.c.b16 %v728, %v727
    %793 = vmatprep.subr.bf16.mxu0 0
    %794 = vmatpush1.bf16.msra.mxu0 %v736
    %795 = vmatprep.subr.bf16.mxu0 0
    %796 = vmatpush1.bf16.msra.mxu0 %v735
    %797 = vmatprep.subr.bf16.mxu0 0
    %798 = vmatpush1.bf16.msra.mxu0 %v734
    %799 = vmatprep.subr.bf16.mxu0 0
    %800 = vmatpush1.bf16.msra.mxu0 %v733
    %801 = vmatprep.subr.bf16.mxu0 0
    %802 = vmatpush1.bf16.msra.mxu0 %v732
    %803 = vmatprep.subr.bf16.mxu0 0
    %804 = vmatpush1.bf16.msra.mxu0 %v731
    %805 = vmatprep.subr.bf16.mxu0 0
    %806 = vmatpush1.bf16.msra.mxu0 %v730
    %807 = vmatprep.subr.bf16.mxu0 0
    %808 = vmatpush1.bf16.msra.mxu0 %v729
    %809 = vmatprep.subr.bf16.mxu0 0
    %810 = vmatpush2.bf16.msra.mxu0 %v744
    %811 = vmatprep.subr.bf16.mxu0 0
    %812 = vmatpush2.bf16.msra.mxu0 %v743
    %813 = vmatprep.subr.bf16.mxu0 0
    %814 = vmatpush2.bf16.msra.mxu0 %v742
    %815 = vmatprep.subr.bf16.mxu0 0
    %816 = vmatpush2.bf16.msra.mxu0 %v741
    %817 = vmatprep.subr.bf16.mxu0 0
    %818 = vmatpush2.bf16.msra.mxu0 %v740
    %819 = vmatprep.subr.bf16.mxu0 0
    %820 = vmatpush2.bf16.msra.mxu0 %v739
    %821 = vmatprep.subr.bf16.mxu0 0
    %822 = vmatpush2.bf16.msra.mxu0 %v738
    %823 = vmatprep.subr.bf16.mxu0 0
    %824 = vmatpush2.bf16.msra.mxu0 %v737
    %825 = vmatprep.mubr.bf16.mxu0 %v527
    %826 = vmatmul.mubr.bf16.gmra.mxu0 %v526
    %v827 = vpop.f32.mrf.mxu0
    %v828 = vadd.f32 %v599, %v827
    %v829 = vpop.f32.mrf.mxu0
    %v830 = vpop.f32.mrf.mxu0
    %v831 = vadd.f32 %v599, %v830
    %v832 = vpop.f32.mrf.mxu0
    %833 = vdwg.mxu0
    %834 = vmatprep.subr.bf16.mxu0 0
    %835 = vmatpush1.bf16.msra.mxu0 %v752
    %836 = vmatprep.subr.bf16.mxu0 0
    %837 = vmatpush1.bf16.msra.mxu0 %v751
    %838 = vmatprep.subr.bf16.mxu0 0
    %839 = vmatpush1.bf16.msra.mxu0 %v750
    %840 = vmatprep.subr.bf16.mxu0 0
    %841 = vmatpush1.bf16.msra.mxu0 %v749
    %842 = vmatprep.subr.bf16.mxu0 0
    %843 = vmatpush1.bf16.msra.mxu0 %v748
    %844 = vmatprep.subr.bf16.mxu0 0
    %845 = vmatpush1.bf16.msra.mxu0 %v747
    %846 = vmatprep.subr.bf16.mxu0 0
    %847 = vmatpush1.bf16.msra.mxu0 %v746
    %848 = vmatprep.subr.bf16.mxu0 0
    %849 = vmatpush1.bf16.msra.mxu0 %v745
    %850 = vmatprep.subr.bf16.mxu0 0
    %851 = vmatpush2.bf16.msra.mxu0 %v760
    %852 = vmatprep.subr.bf16.mxu0 0
    %853 = vmatpush2.bf16.msra.mxu0 %v759
    %854 = vmatprep.subr.bf16.mxu0 0
    %855 = vmatpush2.bf16.msra.mxu0 %v758
    %856 = vmatprep.subr.bf16.mxu0 0
    %857 = vmatpush2.bf16.msra.mxu0 %v757
    %858 = vmatprep.subr.bf16.mxu0 0
    %859 = vmatpush2.bf16.msra.mxu0 %v756
    %860 = vmatprep.subr.bf16.mxu0 0
    %861 = vmatpush2.bf16.msra.mxu0 %v755
    %862 = vmatprep.subr.bf16.mxu0 0
    %863 = vmatpush2.bf16.msra.mxu0 %v754
    %864 = vmatprep.subr.bf16.mxu0 0
    %865 = vmatpush2.bf16.msra.mxu0 %v753
    %866 = vmatprep.mubr.bf16.mxu0 %v529
    %867 = vmatmul.mubr.bf16.gmra.mxu0 %v528
    %v868 = vpop.f32.mrf.mxu0
    %v869 = vadd.f32 %v828, %v868
    %v870 = vpop.f32.mrf.mxu0
    %v871 = vpop.f32.mrf.mxu0
    %v872 = vadd.f32 %v831, %v871
    %v873 = vpop.f32.mrf.mxu0
    %874 = vdwg.mxu0
    %875 = vst.msk [vmem:[#allocation2] sm:$0xff] %vm174, %v869
    %876 = vst.msk [vmem:[#allocation2 + $0x8] sm:$0xff] %vm174, %v872
    // Predicated region
    $region46: #{generator_forward.1} parent=1 // pred_check
      _
    $region47: #{generator_forward.1} parent=1 // pred_check_branch
      %878 = sbr.rel (0) target = $region49
    $region48: #{generator_forward.1} parent=1 // pred_region
      %s880 = ssub.s32 256, 256
      %881 = vsyncadd [#allocation3], %s880
      %s882 = sshll.u32 [#allocation2], 4
      %s883 = int_to_ptr.vmem [resolvable:$true] %s882
      %888 = dma.vmem_to_hbm [thread:$0]  %s883, 256, %s11, [#allocation3], 128, 128, 8
    $region49: #{generator_forward.1} parent=1 // pred_fallthru
      _
    // Predicated region
    $region50: #{generator_forward.1} parent=1 // pred_check
      _
    $region51: #{generator_forward.1} parent=1 // pred_check_branch
      %890 = sbr.rel (0) target = $region53
    $region52: #{generator_forward.1} parent=1 // pred_region
      %891 = dma.done [#allocation3], 256
    $region53: #{generator_forward.1} parent=1 // pred_fallthru
      _
    %892 = vsyncpa [#allocation3], 1

</llo_original>
